<compile_context>
chip_gen: v6e
topology: v6e:2x2x1
jax: 0.10.0
libtpu: 0.0.40
codegen_flags: <defaults>
</compile_context>

<pallas_src>
import functools

import jax
import jax.numpy as jnp
import numpy as np
from jax.experimental import pallas as pl
from jax.experimental.pallas import tpu as pltpu

EPS = 1e-12  # matches the torch module's eps buffer


def _round_up(x, m):
    return (x + m - 1) // m * m


def _sliding_kernel(wm_ref, wh_ref, xm_ref, xh_ref, o_ref, *,
                    K, with_mean, with_std):
    """One (batch, time-tile) grid step of sliding CMVN.

    wm_ref: (tt, tt)        bf16 0/1 band: window weights on this tile's rows
    wh_ref: (tt, K-1)       bf16 0/1 band: window weights on the halo rows
    xm_ref: (1, tt, Dp)     this tile's own rows of x (tail pad handled in wrapper)
    xh_ref: (1, 1, K-1, Dp) halo rows (reflect boundary already applied)
    o_ref : (1, tt, Dp)
    """
    xm = xm_ref[0].astype(jnp.float32)      # (tt, Dp)
    xh = xh_ref[0, 0].astype(jnp.float32)   # (K-1, Dp)
    wm = wm_ref[...]                        # (tt, tt)   bf16
    wh = wh_ref[...]                        # (tt, K-1)  bf16

    # Two-pass-style variance: center on a per-tile/per-feature reference so
    # the E[x^2] - E[x]^2 form below does not cancel catastrophically.
    mu = jnp.mean(xm, axis=0, keepdims=True)            # (1, Dp)
    cm = xm - mu
    ch = xh - mu

    def window_sum(zm, zh):
        # Sliding-window sums on the MXU.  W entries are 0/1 (exact in bf16);
        # the operand is split into bf16 hi+lo so every product is exact and
        # only the f32 accumulation rounds.
        acc = jnp.zeros((zm.shape[0], zm.shape[1]), jnp.float32)
        for w, z in ((wm, zm), (wh, zh)):
            hi = z.astype(jnp.bfloat16)
            lo = (z - hi.astype(jnp.float32)).astype(jnp.bfloat16)
            acc = acc + jnp.dot(w, hi, preferred_element_type=jnp.float32)
            acc = acc + jnp.dot(w, lo, preferred_element_type=jnp.float32)
        return acc

    s = window_sum(cm, ch)               # (tt, Dp) window sums (centered)
    ss = window_sum(cm * cm, ch * ch)    # (tt, Dp) window sums of squares

    m_c = s * (1.0 / K)                                  # window mean - mu
    var_sum = jnp.maximum(ss - s * m_c, 0.0)
    std = jnp.sqrt(var_sum * (1.0 / (K - 1)))            # unbiased, as torch.std

    if with_mean and with_std:
        out = (cm - m_c) / (std + EPS)   # == (x - window_mean) / (std + eps)
    elif with_mean:
        out = cm - m_c
    elif with_std:
        out = xm / (std + EPS)
    else:
        out = xm
    o_ref[0] = out.astype(o_ref.dtype)


def _global_kernel(x_ref, o_ref, *, T):
    """T < kernel_size branch: whole-utterance mean/std over time.

    The torch reference applies BOTH mean and std here regardless of the
    with_mean / with_std flags, so we do the same.
    """
    x = x_ref[0].astype(jnp.float32)                 # (T, D)
    m = jnp.mean(x, axis=0, keepdims=True)           # (1, D)
    d = x - m
    std = jnp.sqrt(jnp.sum(d * d, axis=0, keepdims=True) / (T - 1))
    o_ref[0] = (d / (std + EPS)).astype(o_ref.dtype)


def moving_avg_norm(x, kernel_size=101, with_mean=True, with_std=True,
                    time_tile=256):
    """Pallas implementation of MovingAvgNorm.forward. x: (B, T, D)."""
    assert x.ndim == 3, "Input needs to be tensor of shape B x T x D"
    B, T, D = x.shape
    K = int(kernel_size)

    if T < K:
        kern = functools.partial(_global_kernel, T=T)
        return pl.pallas_call(
            kern,
            out_shape=jax.ShapeDtypeStruct((B, T, D), x.dtype),
            grid_spec=pltpu.PrefetchScalarGridSpec(
                num_scalar_prefetch=0,
                grid=(B,),
                in_specs=[pl.BlockSpec((1, T, D), lambda b: (b, 0, 0))],
                out_specs=pl.BlockSpec((1, T, D), lambda b: (b, 0, 0)),
            ),
            compiler_params=pltpu.CompilerParams(
                dimension_semantics=("parallel",)),
        )(x)

    if K % 2 != 0:
        # TODO(synk): odd kernel_size with T >= K is broken in the reference
        # torch module itself (T-1 windows -> broadcast error), so it has no
        # well-defined semantics to translate.
        raise NotImplementedError(
            "sliding branch requires an even kernel_size (odd K is broken in "
            "the reference torch module as well)")

    left, right = K // 2, K // 2 - 1

    # ---- tiling -------------------------------------------------------------
    Dp = _round_up(D, 128)                       # lane-dense feature dim
    tt = min(_round_up(T, 8), time_tile if Dp <= 256 else max(8, time_tile // 2))
    nt = pl.cdiv(T, tt)
    T_pad = nt * tt

    # ---- main operand -------------------------------------------------------
    # x, followed by the `right` right-reflection rows (needed by the last real
    # rows of the last tile when T % tt != 0) and zeros up to the tiled length.
    # Everything else outside a tile's own rows comes from the small halo
    # gather below, so the full reflect-padded tensor is never built in HBM.
    L = max(T_pad, T + right)
    pieces = [x]
    if right > 0:
        pieces.append(x[:, T - 1 - right:T - 1, :][:, ::-1, :])
    if L > T + right:
        pieces.append(jnp.zeros((B, L - T - right, D), x.dtype))
    xmain = jnp.concatenate(pieces, axis=1) if len(pieces) > 1 else x
    if Dp > D:
        xmain = jnp.pad(xmain, ((0, 0), (0, 0), (0, Dp - D)))

    # ---- halo rows ----------------------------------------------------------
    # Per tile: the K-1 window positions outside the tile (left then right),
    # with the reflect boundary folded into static gather indices.  Positions
    # only reachable from cropped (>= T) output rows are clamped arbitrarily.
    rel = np.concatenate([np.arange(-left, 0), np.arange(tt, tt + right)])
    pos = np.arange(nt)[:, None] * tt + rel[None, :]            # (nt, K-1)
    pos = np.where(pos < 0, -pos, pos)                          # left reflect
    pos = np.where(pos > T - 1, 2 * (T - 1) - pos, pos)         # right reflect
    pos = np.clip(pos, 0, T - 1)
    xhalo = jnp.take(xmain, jnp.asarray(pos), axis=1)           # (B, nt, K-1, Dp)

    # ---- static 0/1 banded window matrices ----------------------------------
    # Row i of the band selects window positions [i, i+K) in tile-window
    # coordinates [halo-left | tile rows | halo-right].  bf16 is exact for 0/1.
    ii = np.arange(tt)[:, None]
    cc = np.arange(tt + K - 1)[None, :]
    band = ((cc >= ii) & (cc < ii + K)).astype(np.float32)
    w_mid = jnp.asarray(band[:, left:left + tt], dtype=jnp.bfloat16)
    w_halo = jnp.asarray(
        np.concatenate([band[:, :left], band[:, left + tt:]], axis=1),
        dtype=jnp.bfloat16)

    kern = functools.partial(_sliding_kernel, K=K,
                             with_mean=with_mean, with_std=with_std)
    out = pl.pallas_call(
        kern,
        out_shape=jax.ShapeDtypeStruct((B, T_pad, Dp), x.dtype),
        grid_spec=pltpu.PrefetchScalarGridSpec(
            num_scalar_prefetch=0,
            grid=(B, nt),
            in_specs=[
                pl.BlockSpec((tt, tt), lambda b, t: (0, 0)),             # w_mid
                pl.BlockSpec((tt, K - 1), lambda b, t: (0, 0)),          # w_halo
                pl.BlockSpec((1, tt, Dp), lambda b, t: (b, t, 0)),       # x tile
                pl.BlockSpec((1, 1, K - 1, Dp), lambda b, t: (b, t, 0, 0)),  # halo
            ],
            out_specs=pl.BlockSpec((1, tt, Dp), lambda b, t: (b, t, 0)),
        ),
        compiler_params=pltpu.CompilerParams(
            dimension_semantics=("parallel", "parallel")),
    )(w_mid, w_halo, xmain, xhalo)
    return out[:, :T, :D]


if __name__ == "__main__":
    key = jax.random.PRNGKey(0)

    def ref_sliding(x, K):
        # Pure-JAX reference mirroring the torch sliding-window semantics.
        _, T, _ = x.shape
        xp = jnp.pad(x, ((0, 0), (K // 2, K // 2 - 1), (0, 0)), mode="reflect")
        idx = jnp.arange(T)[:, None] + jnp.arange(K)[None, :]
        win = xp[:, idx, :]                                  # (B, T, K, D)
        m = win.mean(axis=2)
        std = jnp.sqrt(((win - m[:, :, None, :]) ** 2).sum(axis=2) / (K - 1))
        return (x - m) / (std + EPS)

    # 1) small sliding-branch case (single time tile).
    B, T, D = 2, 32, 16
    K = 16  # even kernel_size; T >= K -> sliding branch
    x = jax.random.normal(key, (B, T, D), dtype=jnp.float32)
    out = jax.block_until_ready(
        moving_avg_norm(x, kernel_size=K, with_mean=True, with_std=True))
    ref = ref_sliding(x, K)
    err = float(jnp.max(jnp.abs(out - ref)))
    assert jnp.allclose(out, ref, atol=1e-4, rtol=1e-4), err

    # 2) multi-tile case with non-aligned shapes (T % tile != 0, D % 128 != 0).
    B2, T2, D2, K2 = 2, 300, 40, 100
    x2 = jax.random.normal(jax.random.PRNGKey(1), (B2, T2, D2), jnp.float32)
    out2 = jax.block_until_ready(moving_avg_norm(x2, kernel_size=K2))
    ref2 = ref_sliding(x2, K2)
    err2 = float(jnp.max(jnp.abs(out2 - ref2)))
    assert jnp.allclose(out2, ref2, atol=1e-4, rtol=1e-4), err2

    # 3) T < kernel_size branch (global CMVN, torch applies both mean and std).
    x3 = x[:, :8]
    out3 = jax.block_until_ready(moving_avg_norm(x3, kernel_size=K))
    m3 = jnp.mean(x3, axis=1, keepdims=True)
    s3 = jnp.std(x3, axis=1, keepdims=True, ddof=1)
    ref3 = (x3 - m3) / (s3 + EPS)
    assert jnp.allclose(out3, ref3, atol=1e-4, rtol=1e-4)

    print("KERNEL_OK")
</pallas_src>

<mosaic_0001>
module attributes {stable_mosaic.version = 11 : i64} {
  func.func @_sliding_kernel(%arg0: i32, %arg1: i32, %arg2: memref<32x32xbf16, #tpu.memory_space<vmem>>, %arg3: memref<32x15xbf16, #tpu.memory_space<vmem>>, %arg4: memref<1x32x128xf32, #tpu.memory_space<vmem>>, %arg5: memref<1x1x15x128xf32, #tpu.memory_space<vmem>>, %arg6: memref<1x32x128xf32, #tpu.memory_space<vmem>>) attributes {dimension_semantics = [#tpu.dimension_semantics<parallel>, #tpu.dimension_semantics<parallel>], iteration_bounds = array<i64: 2, 1>, scalar_prefetch = 0 : i64, scratch_operands = 0 : i64, tpu.core_type = #tpu.core_type<tc>, window_params = [{pipeline_mode = #tpu.pipeline_mode<synchronous>, transform_indices = @transform_0, window_bounds = array<i64: 32, 32>}, {pipeline_mode = #tpu.pipeline_mode<synchronous>, transform_indices = @transform_1, window_bounds = array<i64: 32, 15>}, {transform_indices = @transform_2, window_bounds = array<i64: 1, 32, 128>}, {transform_indices = @transform_3, window_bounds = array<i64: 1, 1, 15, 128>}, {transform_indices = @transform_4, window_bounds = array<i64: 1, 32, 128>}]} {
    %c0 = arith.constant 0 : index
    %c0_0 = arith.constant 0 : index
    %c0_1 = arith.constant 0 : index
    %0 = vector.load %arg4[%c0, %c0_0, %c0_1] : memref<1x32x128xf32, #tpu.memory_space<vmem>>, vector<1x32x128xf32>
    %1 = vector.shape_cast %0 : vector<1x32x128xf32> to vector<32x128xf32>
    %c0_2 = arith.constant 0 : index
    %c0_3 = arith.constant 0 : index
    %c0_4 = arith.constant 0 : index
    %c0_5 = arith.constant 0 : index
    %2 = vector.load %arg5[%c0_2, %c0_3, %c0_4, %c0_5] : memref<1x1x15x128xf32, #tpu.memory_space<vmem>>, vector<1x1x15x128xf32>
    %3 = vector.shape_cast %2 : vector<1x1x15x128xf32> to vector<15x128xf32>
    %c0_6 = arith.constant 0 : index
    %c0_7 = arith.constant 0 : index
    %4 = vector.load %arg2[%c0_6, %c0_7] : memref<32x32xbf16, #tpu.memory_space<vmem>>, vector<32x32xbf16>
    %c0_8 = arith.constant 0 : index
    %c0_9 = arith.constant 0 : index
    %5 = vector.load %arg3[%c0_8, %c0_9] : memref<32x15xbf16, #tpu.memory_space<vmem>>, vector<32x15xbf16>
    %cst = arith.constant dense<0.000000e+00> : vector<128xf32>
    %6 = vector.multi_reduction <add>, %1, %cst [0] : vector<32x128xf32> to vector<128xf32>
    %7 = vector.shape_cast %6 : vector<128xf32> to vector<1x128xf32>
    %cst_10 = arith.constant 3.200000e+01 : f32
    %8 = vector.broadcast %cst_10 : f32 to vector<1x128xf32>
    %9 = arith.divf %7, %8 : vector<1x128xf32>
    %10 = vector.broadcast %9 : vector<1x128xf32> to vector<32x128xf32>
    %11 = arith.subf %1, %10 : vector<32x128xf32>
    %12 = vector.broadcast %9 : vector<1x128xf32> to vector<15x128xf32>
    %13 = arith.subf %3, %12 : vector<15x128xf32>
    %cst_11 = arith.constant 0.000000e+00 : f32
    %14 = vector.broadcast %cst_11 : f32 to vector<32x128xf32>
    %15 = arith.truncf %11 : vector<32x128xf32> to vector<32x128xbf16>
    %16 = arith.extf %15 : vector<32x128xbf16> to vector<32x128xf32>
    %17 = arith.subf %11, %16 : vector<32x128xf32>
    %18 = arith.truncf %17 : vector<32x128xf32> to vector<32x128xbf16>
    %cst_12 = arith.constant dense<0.000000e+00> : vector<32x128xf32>
    %19 = tpu.matmul %4, %15, %cst_12 {dimension_numbers = #tpu.dot_dimension_numbers<[1], [0], [0], [1], [0, 0, 1, 1], [], []>} : vector<32x32xbf16>, vector<32x128xbf16>, vector<32x128xf32> -> vector<32x128xf32>
    %20 = arith.addf %14, %19 : vector<32x128xf32>
    %cst_13 = arith.constant dense<0.000000e+00> : vector<32x128xf32>
    %21 = tpu.matmul %4, %18, %cst_13 {dimension_numbers = #tpu.dot_dimension_numbers<[1], [0], [0], [1], [0, 0, 1, 1], [], []>} : vector<32x32xbf16>, vector<32x128xbf16>, vector<32x128xf32> -> vector<32x128xf32>
    %22 = arith.addf %20, %21 : vector<32x128xf32>
    %23 = arith.truncf %13 : vector<15x128xf32> to vector<15x128xbf16>
    %24 = arith.extf %23 : vector<15x128xbf16> to vector<15x128xf32>
    %25 = arith.subf %13, %24 : vector<15x128xf32>
    %26 = arith.truncf %25 : vector<15x128xf32> to vector<15x128xbf16>
    %cst_14 = arith.constant dense<0.000000e+00> : vector<32x128xf32>
    %27 = tpu.matmul %5, %23, %cst_14 {dimension_numbers = #tpu.dot_dimension_numbers<[1], [0], [0], [1], [0, 0, 1, 1], [], []>} : vector<32x15xbf16>, vector<15x128xbf16>, vector<32x128xf32> -> vector<32x128xf32>
    %28 = arith.addf %22, %27 : vector<32x128xf32>
    %cst_15 = arith.constant dense<0.000000e+00> : vector<32x128xf32>
    %29 = tpu.matmul %5, %26, %cst_15 {dimension_numbers = #tpu.dot_dimension_numbers<[1], [0], [0], [1], [0, 0, 1, 1], [], []>} : vector<32x15xbf16>, vector<15x128xbf16>, vector<32x128xf32> -> vector<32x128xf32>
    %30 = arith.addf %28, %29 : vector<32x128xf32>
    %31 = arith.mulf %11, %11 : vector<32x128xf32>
    %32 = arith.mulf %13, %13 : vector<15x128xf32>
    %cst_16 = arith.constant 0.000000e+00 : f32
    %33 = vector.broadcast %cst_16 : f32 to vector<32x128xf32>
    %34 = arith.truncf %31 : vector<32x128xf32> to vector<32x128xbf16>
    %35 = arith.extf %34 : vector<32x128xbf16> to vector<32x128xf32>
    %36 = arith.subf %31, %35 : vector<32x128xf32>
    %37 = arith.truncf %36 : vector<32x128xf32> to vector<32x128xbf16>
    %cst_17 = arith.constant dense<0.000000e+00> : vector<32x128xf32>
    %38 = tpu.matmul %4, %34, %cst_17 {dimension_numbers = #tpu.dot_dimension_numbers<[1], [0], [0], [1], [0, 0, 1, 1], [], []>} : vector<32x32xbf16>, vector<32x128xbf16>, vector<32x128xf32> -> vector<32x128xf32>
    %39 = arith.addf %33, %38 : vector<32x128xf32>
    %cst_18 = arith.constant dense<0.000000e+00> : vector<32x128xf32>
    %40 = tpu.matmul %4, %37, %cst_18 {dimension_numbers = #tpu.dot_dimension_numbers<[1], [0], [0], [1], [0, 0, 1, 1], [], []>} : vector<32x32xbf16>, vector<32x128xbf16>, vector<32x128xf32> -> vector<32x128xf32>
    %41 = arith.addf %39, %40 : vector<32x128xf32>
    %42 = arith.truncf %32 : vector<15x128xf32> to vector<15x128xbf16>
    %43 = arith.extf %42 : vector<15x128xbf16> to vector<15x128xf32>
    %44 = arith.subf %32, %43 : vector<15x128xf32>
    %45 = arith.truncf %44 : vector<15x128xf32> to vector<15x128xbf16>
    %cst_19 = arith.constant dense<0.000000e+00> : vector<32x128xf32>
    %46 = tpu.matmul %5, %42, %cst_19 {dimension_numbers = #tpu.dot_dimension_numbers<[1], [0], [0], [1], [0, 0, 1, 1], [], []>} : vector<32x15xbf16>, vector<15x128xbf16>, vector<32x128xf32> -> vector<32x128xf32>
    %47 = arith.addf %41, %46 : vector<32x128xf32>
    %cst_20 = arith.constant dense<0.000000e+00> : vector<32x128xf32>
    %48 = tpu.matmul %5, %45, %cst_20 {dimension_numbers = #tpu.dot_dimension_numbers<[1], [0], [0], [1], [0, 0, 1, 1], [], []>} : vector<32x15xbf16>, vector<15x128xbf16>, vector<32x128xf32> -> vector<32x128xf32>
    %49 = arith.addf %47, %48 : vector<32x128xf32>
    %cst_21 = arith.constant 6.250000e-02 : f32
    %50 = vector.broadcast %cst_21 : f32 to vector<32x128xf32>
    %51 = arith.mulf %30, %50 : vector<32x128xf32>
    %52 = arith.mulf %30, %51 : vector<32x128xf32>
    %53 = arith.subf %49, %52 : vector<32x128xf32>
    %cst_22 = arith.constant 0.000000e+00 : f32
    %54 = vector.broadcast %cst_22 : f32 to vector<32x128xf32>
    %55 = arith.maximumf %53, %54 : vector<32x128xf32>
    %cst_23 = arith.constant 0.0666666701 : f32
    %56 = vector.broadcast %cst_23 : f32 to vector<32x128xf32>
    %57 = arith.mulf %55, %56 : vector<32x128xf32>
    %58 = math.sqrt %57 : vector<32x128xf32>
    %59 = arith.subf %11, %51 : vector<32x128xf32>
    %cst_24 = arith.constant 9.99999996E-13 : f32
    %60 = vector.broadcast %cst_24 : f32 to vector<32x128xf32>
    %61 = arith.addf %58, %60 : vector<32x128xf32>
    %62 = arith.divf %59, %61 : vector<32x128xf32>
    %c0_25 = arith.constant 0 : index
    %c0_26 = arith.constant 0 : index
    %c0_27 = arith.constant 0 : index
    %63 = vector.load %arg6[%c0_25, %c0_26, %c0_27] : memref<1x32x128xf32, #tpu.memory_space<vmem>>, vector<1x32x128xf32>
    %64 = vector.shape_cast %63 : vector<1x32x128xf32> to vector<32x128xf32>
    %65 = vector.shape_cast %62 : vector<32x128xf32> to vector<1x32x128xf32>
    tpu.vector_store %arg6[%c0_25, %c0_26, %c0_27], %65 {strides = array<i32>} : memref<1x32x128xf32, #tpu.memory_space<vmem>>, vector<1x32x128xf32>,
    return
  }
  func.func @transform_0(%arg0: i32, %arg1: i32) -> (i32, i32) {
    %c0_i32 = arith.constant 0 : i32
    %c0_i32_0 = arith.constant 0 : i32
    %c0_i32_1 = arith.constant 0 : i32
    return %c0_i32, %c0_i32_0 : i32, i32
  }
  func.func @transform_1(%arg0: i32, %arg1: i32) -> (i32, i32) {
    %c0_i32 = arith.constant 0 : i32
    %c0_i32_0 = arith.constant 0 : i32
    %c0_i32_1 = arith.constant 0 : i32
    return %c0_i32, %c0_i32_0 : i32, i32
  }
  func.func @transform_2(%arg0: i32, %arg1: i32) -> (i32, i32, i32) {
    %c0_i32 = arith.constant 0 : i32
    %c0_i32_0 = arith.constant 0 : i32
    return %arg0, %arg1, %c0_i32 : i32, i32, i32
  }
  func.func @transform_3(%arg0: i32, %arg1: i32) -> (i32, i32, i32, i32) {
    %c0_i32 = arith.constant 0 : i32
    %c0_i32_0 = arith.constant 0 : i32
    %c0_i32_1 = arith.constant 0 : i32
    return %arg0, %arg1, %c0_i32, %c0_i32_0 : i32, i32, i32, i32
  }
  func.func @transform_4(%arg0: i32, %arg1: i32) -> (i32, i32, i32) {
    %c0_i32 = arith.constant 0 : i32
    %c0_i32_0 = arith.constant 0 : i32
    return %arg0, %arg1, %c0_i32 : i32, i32, i32
  }
}

</mosaic_0001>

<llo_original>
// kernel: tpu_custom_call.1
$region0: #{tpu_custom_call.1}
  #allocation0 [shape = 'u32[]', space=smem, size = 0x4, offset = 0x4, fixed_abs, tag = 'smem constant byte address 0x4 - core index']
  #allocation1 [shape = 'u32[144,128]{1,0:T(1,128)}', space=vmem, size = 0x12000, scoped, tag = 'internal scratch']
  %s0 = inlined_call_operand.vmem [shape: bf16[32,32], index: 0, kind: input, shape index: {}]
  %s1 = inlined_call_operand.vmem [shape: bf16[32,15], index: 1, kind: input, shape index: {}]
  %s2 = inlined_call_operand.vmem [shape: f32[2,39,128], index: 2, kind: input, shape index: {}]
  %s3 = inlined_call_operand.vmem [shape: f32[2,1,15,128], index: 3, kind: input, shape index: {}]
  %s4 = inlined_call_operand.hbm [shape: f32[2,32,128], index: 4, kind: output, shape index: {}]
  %s5 = sld [smem:[#allocation0]]
  $region49: #{tpu_custom_call.1} parent=0
    _
  %s7 = ssub.s32 1, %s5
  %s8 = scalar_select 0, %s7, %s5
  $region1: #{tpu_custom_call.1} parent=0
    #allocation2 [shape = 'u8[32768]{0}', space=vmem, size = 0x8000, scoped, tag = 'output window, operand 0']
    #allocation3 [shape = 's32[2]{0}', space=sflag, size = 0x8, scoped, tag = 'scoped memory for tpu_custom_call.1']
    %9 = vsyncpa [#allocation3], 0
    %s10 = scalar_lea.sflag [#allocation3], 1
    %11 = vsyncpa %s10, 0
    loop: start=0, step=1, limit=4
    $region2: #{tpu_custom_call.1} parent=1 // loop_pre_header
      _
    $region3: #{tpu_custom_call.1} parent=1 // loop_header
      %s13 = sphi 0, %s17
      %p14 = scmp.ge.s32.totalorder %s13, 4
      %s20 = sphi 0, %s32
      %s21 = sphi 0, %s28
      %s22 = sphi 0, %s20
      %s23 = sphi 0, %s21
      %s24 = sphi 0, %s22
      %s25 = sphi 0, %s23
      %s33 = sphi 0, %s33
      %s35 = sphi 0, %s33
      %s36 = sphi 0, %s35
      %s50 = sphi 0, %s36
      %s54 = sphi 0, %s54
      %s56 = sphi 0, %s54
      %s57 = sphi 0, %s56
      %s71 = sphi 0, %s57
      %s79 = sphi 0, %s81
      %s82 = sphi 0, %s79
      %s83 = sphi 0, %s82
      %s99 = sphi 0, %s83
      %s107 = sphi 0, %s109
      %s110 = sphi 0, %s107
      %s111 = sphi 0, %s110
      %s127 = sphi 0, %s111
      %s135 = sphi 0, %s137
      %s138 = sphi 0, %s135
      %s139 = sphi 0, %s138
      %s155 = sphi 0, %s139
    $region4: #{tpu_custom_call.1} parent=1 // loop_header_branch
      %16 = sbr.rel (%p14) target = $region8
    $region5: #{tpu_custom_call.1} parent=1 // loop_body
      %s18 = ssub.s32 %s13, 1
      %s19 = ssub.s32 %s13, 2
      %s26 = sadd.s32 1, %s21
      %p27 = scmp.ge.s32.totalorder %s26, 1
      %s28 = scalar_select %p27, 0, %s26
      %s29 = sadd.s32 1, %s20
      %s30 = scalar_select %p27, %s29, %s20
      %p31 = scmp.ge.s32.totalorder %s30, 2
      %s32 = scalar_select %p31, 0, %s30
      %s34 = sadd.s32 %s33, 1
      %p37 = scmp.eq.s32.totalorder %s13, 1
      %p38 = scmp.ne.s32.totalorder %s33, %s35
      %p39 = scmp.eq.s32.totalorder %s13, 0
      %p40 = por %p38, %p39
      %p41 = scmp.ne.s32.totalorder %s33, %s35
      %p42 = scmp.eq.s32.totalorder %s18, 1
      %p43 = por %p41, %p42
      %p44 = scmp.ne.s32.totalorder %s35, %s36
      %p45 = scmp.eq.s32.totalorder %s18, 0
      %p46 = por %p44, %p45
      %p47 = scmp.ne.s32.totalorder %s35, %s36
      %p48 = scmp.eq.s32.totalorder %s19, 1
      %p49 = por %p47, %p48
      %p51 = scmp.ne.s32.totalorder %s36, %s50
      %p52 = scmp.eq.s32.totalorder %s19, 0
      %p53 = por %p51, %p52
      %s55 = sadd.s32 %s54, 1
      %p58 = scmp.eq.s32.totalorder %s13, 1
      %p59 = scmp.ne.s32.totalorder %s54, %s56
      %p60 = scmp.eq.s32.totalorder %s13, 0
      %p61 = por %p59, %p60
      %p62 = scmp.ne.s32.totalorder %s54, %s56
      %p63 = scmp.eq.s32.totalorder %s18, 1
      %p64 = por %p62, %p63
      %p65 = scmp.ne.s32.totalorder %s56, %s57
      %p66 = scmp.eq.s32.totalorder %s18, 0
      %p67 = por %p65, %p66
      %p68 = scmp.ne.s32.totalorder %s56, %s57
      %p69 = scmp.eq.s32.totalorder %s19, 1
      %p70 = por %p68, %p69
      %p72 = scmp.ne.s32.totalorder %s57, %s71
      %p73 = scmp.eq.s32.totalorder %s19, 0
      %p74 = por %p72, %p73
      %s75 = ssub.s32 %s20, %s32
      %s76 = ssub.s32 %s21, %s28
      %s77 = sor.u32 %s75, %s76
      %p78 = scmp.eq.s32.totalorder %s77, 0
      %s80 = sadd.s32 %s79, 1
      %s81 = scalar_select %p78, %s79, %s80
      %p84 = pneg %p78
      %p85 = scmp.eq.s32.totalorder %s13, 1
      %p86 = por %p84, %p85
      %p87 = scmp.ne.s32.totalorder %s79, %s82
      %p88 = scmp.eq.s32.totalorder %s13, 0
      %p89 = por %p87, %p88
      %p90 = scmp.ne.s32.totalorder %s79, %s82
      %p91 = scmp.eq.s32.totalorder %s18, 1
      %p92 = por %p90, %p91
      %p93 = scmp.ne.s32.totalorder %s82, %s83
      %p94 = scmp.eq.s32.totalorder %s18, 0
      %p95 = por %p93, %p94
      %p96 = scmp.ne.s32.totalorder %s82, %s83
      %p97 = scmp.eq.s32.totalorder %s19, 1
      %p98 = por %p96, %p97
      %p100 = scmp.ne.s32.totalorder %s83, %s99
      %p101 = scmp.eq.s32.totalorder %s19, 0
      %p102 = por %p100, %p101
      %s103 = ssub.s32 %s20, %s32
      %s104 = ssub.s32 %s21, %s28
      %s105 = sor.u32 %s103, %s104
      %p106 = scmp.eq.s32.totalorder %s105, 0
      %s108 = sadd.s32 %s107, 1
      %s109 = scalar_select %p106, %s107, %s108
      %p112 = pneg %p106
      %p113 = scmp.eq.s32.totalorder %s13, 1
      %p114 = por %p112, %p113
      %p115 = scmp.ne.s32.totalorder %s107, %s110
      %p116 = scmp.eq.s32.totalorder %s13, 0
      %p117 = por %p115, %p116
      %p118 = scmp.ne.s32.totalorder %s107, %s110
      %p119 = scmp.eq.s32.totalorder %s18, 1
      %p120 = por %p118, %p119
      %p121 = scmp.ne.s32.totalorder %s110, %s111
      %p122 = scmp.eq.s32.totalorder %s18, 0
      %p123 = por %p121, %p122
      %p124 = scmp.ne.s32.totalorder %s110, %s111
      %p125 = scmp.eq.s32.totalorder %s19, 1
      %p126 = por %p124, %p125
      %p128 = scmp.ne.s32.totalorder %s111, %s127
      %p129 = scmp.eq.s32.totalorder %s19, 0
      %p130 = por %p128, %p129
      %s131 = ssub.s32 %s20, %s32
      %s132 = ssub.s32 %s21, %s28
      %s133 = sor.u32 %s131, %s132
      %p134 = scmp.eq.s32.totalorder %s133, 0
      %s136 = sadd.s32 %s135, 1
      %s137 = scalar_select %p134, %s135, %s136
      %p140 = pneg %p134
      %p141 = scmp.eq.s32.totalorder %s13, 1
      %p142 = por %p140, %p141
      %p143 = scmp.ne.s32.totalorder %s135, %s138
      %p144 = scmp.eq.s32.totalorder %s13, 0
      %p145 = por %p143, %p144
      %p146 = scmp.ne.s32.totalorder %s135, %s138
      %p147 = scmp.eq.s32.totalorder %s18, 1
      %p148 = por %p146, %p147
      %p149 = scmp.ne.s32.totalorder %s138, %s139
      %p150 = scmp.eq.s32.totalorder %s18, 0
      %p151 = por %p149, %p150
      %p152 = scmp.ne.s32.totalorder %s138, %s139
      %p153 = scmp.eq.s32.totalorder %s19, 1
      %p154 = por %p152, %p153
      %p156 = scmp.ne.s32.totalorder %s139, %s155
      %p157 = scmp.eq.s32.totalorder %s19, 0
      %p158 = por %p156, %p157
      %p159 = scmp.le.s32.totalorder 1, %s13
      %p160 = scmp.lt.s32.totalorder %s13, 3
      %p161 = pnand %p159, %p160
      %p162 = pneg %p161
      // Predicated region
      $region9: #{tpu_custom_call.1} parent=5 // pred_check
        _
      $region10: #{tpu_custom_call.1} parent=5 // pred_check_branch
        %164 = sbr.rel (%p161) target = $region12
      $region11: #{tpu_custom_call.1} parent=5 // pred_region
        %s165 = ssub.s32 %s13, 1
        // Predicated region
        $region13: #{tpu_custom_call.1} parent=11 // pred_check
          %p166 = pneg %p46
        $region14: #{tpu_custom_call.1} parent=11 // pred_check_branch
          %168 = sbr.rel (%p166) target = $region16
        $region15: #{tpu_custom_call.1} parent=11 // pred_region
          _
        $region16: #{tpu_custom_call.1} parent=11 // pred_fallthru
          _
        // Predicated region
        $region17: #{tpu_custom_call.1} parent=11 // pred_check
          %p169 = pneg %p67
        $region18: #{tpu_custom_call.1} parent=11 // pred_check_branch
          %171 = sbr.rel (%p169) target = $region20
        $region19: #{tpu_custom_call.1} parent=11 // pred_region
          _
        $region20: #{tpu_custom_call.1} parent=11 // pred_fallthru
          _
      $region12: #{tpu_custom_call.1} parent=5 // pred_fallthru
        _
      %p172 = scmp.lt.s32.totalorder %s13, 2
      // Predicated region
      $region21: #{tpu_custom_call.1} parent=5 // pred_check
        %p173 = pneg %p172
      $region22: #{tpu_custom_call.1} parent=5 // pred_check_branch
        %175 = sbr.rel (%p173) target = $region24
      $region23: #{tpu_custom_call.1} parent=5 // pred_region
        // Predicated region
        $region25: #{tpu_custom_call.1} parent=23 // pred_check
          %p176 = pneg %p89
        $region26: #{tpu_custom_call.1} parent=23 // pred_check_branch
          %178 = sbr.rel (%p176) target = $region28
        $region27: #{tpu_custom_call.1} parent=23 // pred_region
          %s179 = smul.u32 4, %s21
          %s180 = ssub.s32 5, %s179
          %p181 = scmp.lt.s32.totalorder %s180, 4
          %s182 = scalar_select %p181, %s180, 4
          %s183 = smul.u32 128, %s182
          %p184 = scmp.lt.s32.totalorder %s20, 1
          %s185 = scalar_select %p184, %s20, 1
          %p186 = scmp.lt.s32.totalorder %s179, 4
          %s187 = scalar_select %p186, %s179, 4
          %s188 = smul.addr %s185, 5
          %s189 = sadd.s32 %s187, %s188
          %s190 = smul.addr %s189, 8
          %s191 = scalar_lea.vmem %s2, %s190
          %s192 = smul.u32 4, %s21
          %s193 = ssub.s32 5, %s192
          %p194 = scmp.lt.s32.totalorder %s193, 4
          %s195 = scalar_select %p194, %s193, 4
          %s196 = smul.u32 128, %s195
        $region28: #{tpu_custom_call.1} parent=23 // pred_fallthru
          _
        // Predicated region
        $region29: #{tpu_custom_call.1} parent=23 // pred_check
          %p197 = pneg %p117
        $region30: #{tpu_custom_call.1} parent=23 // pred_check_branch
          %199 = sbr.rel (%p197) target = $region32
        $region31: #{tpu_custom_call.1} parent=23 // pred_region
          %p200 = scmp.lt.s32.totalorder %s20, 1
          %s201 = scalar_select %p200, %s20, 1
          %p202 = scmp.lt.s32.totalorder %s21, 0
          %s203 = scalar_select %p202, %s21, 0
          %s204 = smul.addr %s203, 2
          %s205 = smul.addr %s201, 2
          %s206 = sadd.s32 %s204, %s205
          %s207 = smul.addr %s206, 8
          %s208 = scalar_lea.vmem %s3, %s207
        $region32: #{tpu_custom_call.1} parent=23 // pred_fallthru
          _
      $region24: #{tpu_custom_call.1} parent=5 // pred_fallthru
        _
      %p209 = scmp.le.s32.totalorder 1, %s13
      %p210 = scmp.lt.s32.totalorder %s13, 3
      %p211 = pnand %p209, %p210
      %p212 = pneg %p211
      // Predicated region
      $region33: #{tpu_custom_call.1} parent=5 // pred_check
        _
      $region34: #{tpu_custom_call.1} parent=5 // pred_check_branch
        %214 = sbr.rel (%p211) target = $region36
      $region35: #{tpu_custom_call.1} parent=5 // pred_region
        %s215 = ssub.s32 %s13, 1
        %p216 = pneg %p46
        %p217 = pneg %p43
        %p218 = pneg %p67
        %p219 = pneg %p64
        %s220 = smul.u32 4, %s23
        %s221 = ssub.s32 5, %s220
        %p222 = scmp.lt.s32.totalorder %s221, 4
        %s223 = scalar_select %p222, %s221, 4
        %s224 = smul.u32 128, %s223
        %p225 = scmp.lt.s32.totalorder %s22, 1
        %s226 = scalar_select %p225, %s22, 1
        %p227 = scmp.lt.s32.totalorder %s220, 4
        %s228 = scalar_select %p227, %s220, 4
        %s229 = smul.addr %s226, 5
        %s230 = sadd.s32 %s228, %s229
        %s231 = smul.addr %s230, 8
        %s232 = scalar_lea.vmem %s2, %s231
        %p233 = pneg %p95
        %p234 = pneg %p92
        %p235 = scmp.lt.s32.totalorder %s22, 1
        %s236 = scalar_select %p235, %s22, 1
        %p237 = scmp.lt.s32.totalorder %s23, 0
        %s238 = scalar_select %p237, %s23, 0
        %s239 = smul.addr %s238, 2
        %s240 = smul.addr %s236, 2
        %s241 = sadd.s32 %s239, %s240
        %s242 = smul.addr %s241, 8
        %s243 = scalar_lea.vmem %s3, %s242
        %p244 = pneg %p123
        %p245 = pneg %p120
        %p246 = pneg %p151
        %p247 = pneg %p148
        %s248 = sand.u32 %s138, 1
        %s249 = scalar_lea.sflag [#allocation3], %s248
        %s250 = sand.u32 %s138, 1
        %s251 = smul.addr %s250, 32
        %s252 = scalar_lea.vmem [#allocation2], %s251
        %s253 = smul.u32 4, %s23
        %s254 = ssub.s32 5, %s253
        %p255 = scmp.lt.s32.totalorder %s254, 4
        %s256 = scalar_select %p255, %s254, 4
        %s257 = smul.u32 128, %s256
        %p258 = scmp.lt.s32.totalorder %s22, 1
        %s259 = scalar_select %p258, %s22, 1
        %p260 = scmp.lt.s32.totalorder %s253, 4
        %s261 = scalar_select %p260, %s253, 4
        %s262 = smul.addr %s259, 5
        %s263 = sadd.s32 %s261, %s262
        %s264 = smul.addr %s263, 8
        %s265 = scalar_lea.vmem %s2, %s264
        %s266 = smul.u32 4, %s23
        %s267 = ssub.s32 5, %s266
        %p268 = scmp.lt.s32.totalorder %s267, 4
        %s269 = scalar_select %p268, %s267, 4
        %s270 = smul.u32 128, %s269
        %p271 = scmp.lt.s32.totalorder %s22, 1
        %s272 = scalar_select %p271, %s22, 1
        %p273 = scmp.lt.s32.totalorder %s23, 0
        %s274 = scalar_select %p273, %s23, 0
        %s275 = smul.addr %s274, 2
        %s276 = smul.addr %s272, 2
        %s277 = sadd.s32 %s275, %s276
        %s278 = smul.addr %s277, 8
        %s279 = scalar_lea.vmem %s3, %s278
        %s280 = smul.u32 4, %s23
        %v282 = vld [vmem:[%s265] sm:$0xff]
        %v283 = vld [vmem:[%s265 + $0x8] sm:$0xff]
        %v284 = vld [vmem:[%s265 + $0x10] sm:$0xff]
        %v285 = vld [vmem:[%s265 + $0x18] sm:$0xff]
        %v286 = vld [vmem:[%s279] sm:$0xff]
        %v287 = vld [vmem:[%s279 + $0x8] sm:$0x7f]
        %v288 = vld [vmem:[%s0] sm:$0xf]
        %v289 = vld [vmem:[%s0 + $0x4] sm:$0xf]
        %v290 = vld [vmem:[%s0 + $0x8] sm:$0xf]
        %v291 = vld [vmem:[%s0 + $0xc] sm:$0xf]
        %v292 = vld [vmem:[%s1] sm:$0xf]
        %v293 = vld [vmem:[%s1 + $0x4] sm:$0xf]
        %v294 = vld [vmem:[%s1 + $0x8] sm:$0xf]
        %v295 = vld [vmem:[%s1 + $0xc] sm:$0xf]
        %v296 = vadd.f32 %v282, %v283
        %v297 = vadd.f32 %v296, %v284
        %v298 = vadd.f32 %v297, %v285
        %v299 = vrot.slane %v298, 4
        %v300 = vadd.f32 %v298, %v299
        %v301 = vrot.slane %v300, 2
        %v302 = vadd.f32 %v300, %v301
        %v303 = vrot.slane %v302, 1
        %v304 = vadd.f32 %v302, %v303
        %v305 = vrcp.pop 32.0
        %v306 = vmul.f32 %v304, %v305
        %v307 = vsub.f32 %v282, %v306
        %v308 = vsub.f32 %v283, %v306
        %v309 = vsub.f32 %v284, %v306
        %v310 = vsub.f32 %v285, %v306
        %v311 = vsub.f32 %v286, %v306
        %v312 = vsub.f32 %v287, %v306
        %v313 = vpack.c.bf16 %v308, %v307
        %v314 = vpack.c.bf16 %v310, %v309
        %v315 = vunpack.c.l.bf16 %v313
        %v316 = vunpack.c.h.bf16 %v313
        %v317 = vunpack.c.l.bf16 %v314
        %v318 = vunpack.c.h.bf16 %v314
        %v319 = vsub.f32 %v307, %v315
        %v320 = vsub.f32 %v308, %v316
        %v321 = vsub.f32 %v309, %v317
        %v322 = vsub.f32 %v310, %v318
        %v323 = vpack.c.bf16 %v320, %v319
        %v324 = vpack.c.bf16 %v322, %v321
        %v329 = vunpack.c.l.b16 %v288
        %v330 = vunpack.c.l.b16 %v289
        %v331 = vunpack.c.l.b16 %v290
        %v332 = vunpack.c.l.b16 %v291
        %v333 = vpack.c.b16 %v330, %v329
        %v334 = vpack.c.b16 %v332, %v331
        %vm335 = vcmask 261120
        %v337 = vsel %vm335, %v333, 0
        %v340 = vsel %vm335, %v334, 0
        %342 = vmatprep.subr.bf16.mxu0 0
        %343 = vmatpush1.bf16.msra.mxu0 0
        %344 = vmatprep.subr.bf16.mxu0 0
        %345 = vmatpush1.bf16.msra.mxu0 0
        %346 = vmatprep.subr.bf16.mxu0 0
        %347 = vmatpush1.bf16.msra.mxu0 0
        %348 = vmatprep.subr.bf16.mxu0 0
        %349 = vmatpush1.bf16.msra.mxu0 0
        %350 = vmatprep.subr.bf16.mxu0 0
        %351 = vmatpush1.bf16.msra.mxu0 0
        %352 = vmatprep.subr.bf16.mxu0 0
        %353 = vmatpush1.bf16.msra.mxu0 0
        %354 = vmatprep.subr.bf16.mxu0 0
        %355 = vmatpush1.bf16.msra.mxu0 %v324
        %356 = vmatprep.subr.bf16.mxu0 0
        %357 = vmatpush1.bf16.msra.mxu0 %v323
        %358 = vmatprep.subr.bf16.mxu0 0
        %359 = vmatpush2.bf16.msra.mxu0 0
        %360 = vmatprep.subr.bf16.mxu0 0
        %361 = vmatpush2.bf16.msra.mxu0 0
        %362 = vmatprep.subr.bf16.mxu0 0
        %363 = vmatpush2.bf16.msra.mxu0 0
        %364 = vmatprep.subr.bf16.mxu0 0
        %365 = vmatpush2.bf16.msra.mxu0 0
        %366 = vmatprep.subr.bf16.mxu0 0
        %367 = vmatpush2.bf16.msra.mxu0 0
        %368 = vmatprep.subr.bf16.mxu0 0
        %369 = vmatpush2.bf16.msra.mxu0 0
        %370 = vmatprep.subr.bf16.mxu0 0
        %371 = vmatpush2.bf16.msra.mxu0 0
        %372 = vmatprep.subr.bf16.mxu0 0
        %373 = vmatpush2.bf16.msra.mxu0 0
        %374 = vmatprep.mubr.bf16.mxu0 0
        %375 = vmatmul.mubr.bf16.gmra.mxu0 %v337
        %v376 = vpop.f32.mrf.mxu0
        %v377 = vadd.f32 0.0, %v376
        %v378 = vpop.f32.mrf.mxu0
        %v379 = vpop.f32.mrf.mxu0
        %v380 = vadd.f32 0.0, %v379
        %v381 = vpop.f32.mrf.mxu0
        %382 = vmatprep.mubr.bf16.mxu0 0
        %383 = vmatmul.mubr.bf16.gmra.mxu0 %v340
        %v384 = vpop.f32.mrf.mxu0
        %v385 = vadd.f32 0.0, %v384
        %v386 = vpop.f32.mrf.mxu0
        %v387 = vpop.f32.mrf.mxu0
        %v388 = vadd.f32 0.0, %v387
        %v389 = vpop.f32.mrf.mxu0
        %390 = vdwg.mxu0
        %391 = vmatprep.subr.bf16.mxu0 0
        %392 = vmatpush1.bf16.msra.mxu0 0
        %393 = vmatprep.subr.bf16.mxu0 0
        %394 = vmatpush1.bf16.msra.mxu0 0
        %395 = vmatprep.subr.bf16.mxu0 0
        %396 = vmatpush1.bf16.msra.mxu0 0
        %397 = vmatprep.subr.bf16.mxu0 0
        %398 = vmatpush1.bf16.msra.mxu0 0
        %399 = vmatprep.subr.bf16.mxu0 0
        %400 = vmatpush1.bf16.msra.mxu0 0
        %401 = vmatprep.subr.bf16.mxu0 0
        %402 = vmatpush1.bf16.msra.mxu0 0
        %403 = vmatprep.subr.bf16.mxu0 0
        %404 = vmatpush1.bf16.msra.mxu0 %v314
        %405 = vmatprep.subr.bf16.mxu0 0
        %406 = vmatpush1.bf16.msra.mxu0 %v313
        %407 = vmatprep.subr.bf16.mxu0 0
        %408 = vmatpush2.bf16.msra.mxu0 0
        %409 = vmatprep.subr.bf16.mxu0 0
        %410 = vmatpush2.bf16.msra.mxu0 0
        %411 = vmatprep.subr.bf16.mxu0 0
        %412 = vmatpush2.bf16.msra.mxu0 0
        %413 = vmatprep.subr.bf16.mxu0 0
        %414 = vmatpush2.bf16.msra.mxu0 0
        %415 = vmatprep.subr.bf16.mxu0 0
        %416 = vmatpush2.bf16.msra.mxu0 0
        %417 = vmatprep.subr.bf16.mxu0 0
        %418 = vmatpush2.bf16.msra.mxu0 0
        %419 = vmatprep.subr.bf16.mxu0 0
        %420 = vmatpush2.bf16.msra.mxu0 0
        %421 = vmatprep.subr.bf16.mxu0 0
        %422 = vmatpush2.bf16.msra.mxu0 0
        %423 = vmatprep.mubr.bf16.mxu0 0
        %424 = vmatmul.mubr.bf16.gmra.mxu0 %v337
        %v425 = vpop.f32.mrf.mxu0
        %v426 = vadd.f32 %v377, %v425
        %v427 = vpop.f32.mrf.mxu0
        %v428 = vpop.f32.mrf.mxu0
        %v429 = vadd.f32 %v380, %v428
        %v430 = vpop.f32.mrf.mxu0
        %431 = vmatprep.mubr.bf16.mxu0 0
        %432 = vmatmul.mubr.bf16.gmra.mxu0 %v340
        %v433 = vpop.f32.mrf.mxu0
        %v434 = vadd.f32 %v385, %v433
        %v435 = vpop.f32.mrf.mxu0
        %v436 = vpop.f32.mrf.mxu0
        %v437 = vadd.f32 %v388, %v436
        %v438 = vpop.f32.mrf.mxu0
        %439 = vdwg.mxu0
        %v440 = vpack.c.bf16 %v312, %v311
        %v441 = vunpack.c.l.bf16 %v440
        %v442 = vunpack.c.h.bf16 %v440
        %v443 = vsub.f32 %v311, %v441
        %v444 = vsub.f32 %v312, %v442
        %v445 = vpack.c.bf16 %v444, %v443
        %v450 = vunpack.c.l.b16 %v292
        %v451 = vunpack.c.l.b16 %v293
        %v452 = vunpack.c.l.b16 %v294
        %v453 = vunpack.c.l.b16 %v295
        %v454 = vpack.c.b16 %v451, %v450
        %v455 = vpack.c.b16 %v453, %v452
        %vm456 = vcmask 121856
        %v458 = vsel %vm456, %v454, 0
        %v461 = vsel %vm456, %v455, 0
        %vm463 = vcmask 1046528
        %vm464 = vcmask 1047552
        %v465 = vsel %vm463, 4294967295, 65535
        %v466 = vsel %vm464, %v465, 0
        %v468 = vand.u32 %v440, %v466
        %470 = vmatprep.subr.bf16.mxu0 0
        %471 = vmatpush1.bf16.msra.mxu0 0
        %472 = vmatprep.subr.bf16.mxu0 0
        %473 = vmatpush1.bf16.msra.mxu0 0
        %474 = vmatprep.subr.bf16.mxu0 0
        %475 = vmatpush1.bf16.msra.mxu0 0
        %476 = vmatprep.subr.bf16.mxu0 0
        %477 = vmatpush1.bf16.msra.mxu0 0
        %478 = vmatprep.subr.bf16.mxu0 0
        %479 = vmatpush1.bf16.msra.mxu0 0
        %480 = vmatprep.subr.bf16.mxu0 0
        %481 = vmatpush1.bf16.msra.mxu0 0
        %482 = vmatprep.subr.bf16.mxu0 0
        %483 = vmatpush1.bf16.msra.mxu0 0
        %484 = vmatprep.subr.bf16.mxu0 0
        %485 = vmatpush1.bf16.msra.mxu0 %v468
        %486 = vmatprep.subr.bf16.mxu0 0
        %487 = vmatpush2.bf16.msra.mxu0 0
        %488 = vmatprep.subr.bf16.mxu0 0
        %489 = vmatpush2.bf16.msra.mxu0 0
        %490 = vmatprep.subr.bf16.mxu0 0
        %491 = vmatpush2.bf16.msra.mxu0 0
        %492 = vmatprep.subr.bf16.mxu0 0
        %493 = vmatpush2.bf16.msra.mxu0 0
        %494 = vmatprep.subr.bf16.mxu0 0
        %495 = vmatpush2.bf16.msra.mxu0 0
        %496 = vmatprep.subr.bf16.mxu0 0
        %497 = vmatpush2.bf16.msra.mxu0 0
        %498 = vmatprep.subr.bf16.mxu0 0
        %499 = vmatpush2.bf16.msra.mxu0 0
        %500 = vmatprep.subr.bf16.mxu0 0
        %501 = vmatpush2.bf16.msra.mxu0 0
        %502 = vmatprep.mubr.bf16.mxu0 0
        %503 = vmatmul.mubr.bf16.gmra.mxu0 %v458
        %v504 = vpop.f32.mrf.mxu0
        %v505 = vadd.f32 0.0, %v504
        %v506 = vpop.f32.mrf.mxu0
        %v507 = vpop.f32.mrf.mxu0
        %v508 = vadd.f32 0.0, %v507
        %v509 = vpop.f32.mrf.mxu0
        %510 = vmatprep.mubr.bf16.mxu0 0
        %511 = vmatmul.mubr.bf16.gmra.mxu0 %v461
        %v512 = vpop.f32.mrf.mxu0
        %v513 = vadd.f32 0.0, %v512
        %v514 = vpop.f32.mrf.mxu0
        %v515 = vpop.f32.mrf.mxu0
        %v516 = vadd.f32 0.0, %v515
        %v517 = vpop.f32.mrf.mxu0
        %518 = vdwg.mxu0
        %v519 = vadd.f32 %v426, %v505
        %v520 = vadd.f32 %v429, %v508
        %v521 = vadd.f32 %v434, %v513
        %v522 = vadd.f32 %v437, %v516
        %v524 = vand.u32 %v445, %v466
        %526 = vmatprep.subr.bf16.mxu0 0
        %527 = vmatpush1.bf16.msra.mxu0 0
        %528 = vmatprep.subr.bf16.mxu0 0
        %529 = vmatpush1.bf16.msra.mxu0 0
        %530 = vmatprep.subr.bf16.mxu0 0
        %531 = vmatpush1.bf16.msra.mxu0 0
        %532 = vmatprep.subr.bf16.mxu0 0
        %533 = vmatpush1.bf16.msra.mxu0 0
        %534 = vmatprep.subr.bf16.mxu0 0
        %535 = vmatpush1.bf16.msra.mxu0 0
        %536 = vmatprep.subr.bf16.mxu0 0
        %537 = vmatpush1.bf16.msra.mxu0 0
        %538 = vmatprep.subr.bf16.mxu0 0
        %539 = vmatpush1.bf16.msra.mxu0 0
        %540 = vmatprep.subr.bf16.mxu0 0
        %541 = vmatpush1.bf16.msra.mxu0 %v524
        %542 = vmatprep.subr.bf16.mxu0 0
        %543 = vmatpush2.bf16.msra.mxu0 0
        %544 = vmatprep.subr.bf16.mxu0 0
        %545 = vmatpush2.bf16.msra.mxu0 0
        %546 = vmatprep.subr.bf16.mxu0 0
        %547 = vmatpush2.bf16.msra.mxu0 0
        %548 = vmatprep.subr.bf16.mxu0 0
        %549 = vmatpush2.bf16.msra.mxu0 0
        %550 = vmatprep.subr.bf16.mxu0 0
        %551 = vmatpush2.bf16.msra.mxu0 0
        %552 = vmatprep.subr.bf16.mxu0 0
        %553 = vmatpush2.bf16.msra.mxu0 0
        %554 = vmatprep.subr.bf16.mxu0 0
        %555 = vmatpush2.bf16.msra.mxu0 0
        %556 = vmatprep.subr.bf16.mxu0 0
        %557 = vmatpush2.bf16.msra.mxu0 0
        %558 = vmatprep.mubr.bf16.mxu0 0
        %559 = vmatmul.mubr.bf16.gmra.mxu0 %v458
        %v560 = vpop.f32.mrf.mxu0
        %v561 = vadd.f32 0.0, %v560
        %v562 = vpop.f32.mrf.mxu0
        %v563 = vpop.f32.mrf.mxu0
        %v564 = vadd.f32 0.0, %v563
        %v565 = vpop.f32.mrf.mxu0
        %566 = vmatprep.mubr.bf16.mxu0 0
        %567 = vmatmul.mubr.bf16.gmra.mxu0 %v461
        %v568 = vpop.f32.mrf.mxu0
        %v569 = vadd.f32 0.0, %v568
        %v570 = vpop.f32.mrf.mxu0
        %v571 = vpop.f32.mrf.mxu0
        %v572 = vadd.f32 0.0, %v571
        %v573 = vpop.f32.mrf.mxu0
        %574 = vdwg.mxu0
        %v575 = vadd.f32 %v519, %v561
        %v576 = vadd.f32 %v520, %v564
        %v577 = vadd.f32 %v521, %v569
        %v578 = vadd.f32 %v522, %v572
        %v579 = vmul.f32 %v307, %v307
        %v580 = vmul.f32 %v308, %v308
        %v581 = vmul.f32 %v309, %v309
        %v582 = vmul.f32 %v310, %v310
        %v583 = vmul.f32 %v311, %v311
        %v584 = vmul.f32 %v312, %v312
        %v585 = vpack.c.bf16 %v580, %v579
        %v586 = vpack.c.bf16 %v582, %v581
        %v587 = vunpack.c.l.bf16 %v585
        %v588 = vunpack.c.h.bf16 %v585
        %v589 = vunpack.c.l.bf16 %v586
        %v590 = vunpack.c.h.bf16 %v586
        %v591 = vsub.f32 %v579, %v587
        %v592 = vsub.f32 %v580, %v588
        %v593 = vsub.f32 %v581, %v589
        %v594 = vsub.f32 %v582, %v590
        %v595 = vpack.c.bf16 %v592, %v591
        %v596 = vpack.c.bf16 %v594, %v593
        %597 = vmatprep.subr.bf16.mxu0 0
        %598 = vmatpush1.bf16.msra.mxu0 0
        %599 = vmatprep.subr.bf16.mxu0 0
        %600 = vmatpush1.bf16.msra.mxu0 0
        %601 = vmatprep.subr.bf16.mxu0 0
        %602 = vmatpush1.bf16.msra.mxu0 0
        %603 = vmatprep.subr.bf16.mxu0 0
        %604 = vmatpush1.bf16.msra.mxu0 0
        %605 = vmatprep.subr.bf16.mxu0 0
        %606 = vmatpush1.bf16.msra.mxu0 0
        %607 = vmatprep.subr.bf16.mxu0 0
        %608 = vmatpush1.bf16.msra.mxu0 0
        %609 = vmatprep.subr.bf16.mxu0 0
        %610 = vmatpush1.bf16.msra.mxu0 %v596
        %611 = vmatprep.subr.bf16.mxu0 0
        %612 = vmatpush1.bf16.msra.mxu0 %v595
        %613 = vmatprep.subr.bf16.mxu0 0
        %614 = vmatpush2.bf16.msra.mxu0 0
        %615 = vmatprep.subr.bf16.mxu0 0
        %616 = vmatpush2.bf16.msra.mxu0 0
        %617 = vmatprep.subr.bf16.mxu0 0
        %618 = vmatpush2.bf16.msra.mxu0 0
        %619 = vmatprep.subr.bf16.mxu0 0
        %620 = vmatpush2.bf16.msra.mxu0 0
        %621 = vmatprep.subr.bf16.mxu0 0
        %622 = vmatpush2.bf16.msra.mxu0 0
        %623 = vmatprep.subr.bf16.mxu0 0
        %624 = vmatpush2.bf16.msra.mxu0 0
        %625 = vmatprep.subr.bf16.mxu0 0
        %626 = vmatpush2.bf16.msra.mxu0 0
        %627 = vmatprep.subr.bf16.mxu0 0
        %628 = vmatpush2.bf16.msra.mxu0 0
        %629 = vmatprep.mubr.bf16.mxu0 0
        %630 = vmatmul.mubr.bf16.gmra.mxu0 %v337
        %v631 = vpop.f32.mrf.mxu0
        %v632 = vadd.f32 0.0, %v631
        %v633 = vpop.f32.mrf.mxu0
        %v634 = vpop.f32.mrf.mxu0
        %v635 = vadd.f32 0.0, %v634
        %v636 = vpop.f32.mrf.mxu0
        %637 = vmatprep.mubr.bf16.mxu0 0
        %638 = vmatmul.mubr.bf16.gmra.mxu0 %v340
        %v639 = vpop.f32.mrf.mxu0
        %v640 = vadd.f32 0.0, %v639
        %v641 = vpop.f32.mrf.mxu0
        %v642 = vpop.f32.mrf.mxu0
        %v643 = vadd.f32 0.0, %v642
        %v644 = vpop.f32.mrf.mxu0
        %645 = vdwg.mxu0
        %646 = vmatprep.subr.bf16.mxu0 0
        %647 = vmatpush1.bf16.msra.mxu0 0
        %648 = vmatprep.subr.bf16.mxu0 0
        %649 = vmatpush1.bf16.msra.mxu0 0
        %650 = vmatprep.subr.bf16.mxu0 0
        %651 = vmatpush1.bf16.msra.mxu0 0
        %652 = vmatprep.subr.bf16.mxu0 0
        %653 = vmatpush1.bf16.msra.mxu0 0
        %654 = vmatprep.subr.bf16.mxu0 0
        %655 = vmatpush1.bf16.msra.mxu0 0
        %656 = vmatprep.subr.bf16.mxu0 0
        %657 = vmatpush1.bf16.msra.mxu0 0
        %658 = vmatprep.subr.bf16.mxu0 0
        %659 = vmatpush1.bf16.msra.mxu0 %v586
        %660 = vmatprep.subr.bf16.mxu0 0
        %661 = vmatpush1.bf16.msra.mxu0 %v585
        %662 = vmatprep.subr.bf16.mxu0 0
        %663 = vmatpush2.bf16.msra.mxu0 0
        %664 = vmatprep.subr.bf16.mxu0 0
        %665 = vmatpush2.bf16.msra.mxu0 0
        %666 = vmatprep.subr.bf16.mxu0 0
        %667 = vmatpush2.bf16.msra.mxu0 0
        %668 = vmatprep.subr.bf16.mxu0 0
        %669 = vmatpush2.bf16.msra.mxu0 0
        %670 = vmatprep.subr.bf16.mxu0 0
        %671 = vmatpush2.bf16.msra.mxu0 0
        %672 = vmatprep.subr.bf16.mxu0 0
        %673 = vmatpush2.bf16.msra.mxu0 0
        %674 = vmatprep.subr.bf16.mxu0 0
        %675 = vmatpush2.bf16.msra.mxu0 0
        %676 = vmatprep.subr.bf16.mxu0 0
        %677 = vmatpush2.bf16.msra.mxu0 0
        %678 = vmatprep.mubr.bf16.mxu0 0
        %679 = vmatmul.mubr.bf16.gmra.mxu0 %v337
        %v680 = vpop.f32.mrf.mxu0
        %v681 = vadd.f32 %v632, %v680
        %v682 = vpop.f32.mrf.mxu0
        %v683 = vpop.f32.mrf.mxu0
        %v684 = vadd.f32 %v635, %v683
        %v685 = vpop.f32.mrf.mxu0
        %686 = vmatprep.mubr.bf16.mxu0 0
        %687 = vmatmul.mubr.bf16.gmra.mxu0 %v340
        %v688 = vpop.f32.mrf.mxu0
        %v689 = vadd.f32 %v640, %v688
        %v690 = vpop.f32.mrf.mxu0
        %v691 = vpop.f32.mrf.mxu0
        %v692 = vadd.f32 %v643, %v691
        %v693 = vpop.f32.mrf.mxu0
        %694 = vdwg.mxu0
        %v695 = vpack.c.bf16 %v584, %v583
        %v696 = vunpack.c.l.bf16 %v695
        %v697 = vunpack.c.h.bf16 %v695
        %v698 = vsub.f32 %v583, %v696
        %v699 = vsub.f32 %v584, %v697
        %v700 = vpack.c.bf16 %v699, %v698
        %v702 = vand.u32 %v695, %v466
        %704 = vmatprep.subr.bf16.mxu0 0
        %705 = vmatpush1.bf16.msra.mxu0 0
        %706 = vmatprep.subr.bf16.mxu0 0
        %707 = vmatpush1.bf16.msra.mxu0 0
        %708 = vmatprep.subr.bf16.mxu0 0
        %709 = vmatpush1.bf16.msra.mxu0 0
        %710 = vmatprep.subr.bf16.mxu0 0
        %711 = vmatpush1.bf16.msra.mxu0 0
        %712 = vmatprep.subr.bf16.mxu0 0
        %713 = vmatpush1.bf16.msra.mxu0 0
        %714 = vmatprep.subr.bf16.mxu0 0
        %715 = vmatpush1.bf16.msra.mxu0 0
        %716 = vmatprep.subr.bf16.mxu0 0
        %717 = vmatpush1.bf16.msra.mxu0 0
        %718 = vmatprep.subr.bf16.mxu0 0
        %719 = vmatpush1.bf16.msra.mxu0 %v702
        %720 = vmatprep.subr.bf16.mxu0 0
        %721 = vmatpush2.bf16.msra.mxu0 0
        %722 = vmatprep.subr.bf16.mxu0 0
        %723 = vmatpush2.bf16.msra.mxu0 0
        %724 = vmatprep.subr.bf16.mxu0 0
        %725 = vmatpush2.bf16.msra.mxu0 0
        %726 = vmatprep.subr.bf16.mxu0 0
        %727 = vmatpush2.bf16.msra.mxu0 0
        %728 = vmatprep.subr.bf16.mxu0 0
        %729 = vmatpush2.bf16.msra.mxu0 0
        %730 = vmatprep.subr.bf16.mxu0 0
        %731 = vmatpush2.bf16.msra.mxu0 0
        %732 = vmatprep.subr.bf16.mxu0 0
        %733 = vmatpush2.bf16.msra.mxu0 0
        %734 = vmatprep.subr.bf16.mxu0 0
        %735 = vmatpush2.bf16.msra.mxu0 0
        %736 = vmatprep.mubr.bf16.mxu0 0
        %737 = vmatmul.mubr.bf16.gmra.mxu0 %v458
        %v738 = vpop.f32.mrf.mxu0
        %v739 = vadd.f32 0.0, %v738
        %v740 = vpop.f32.mrf.mxu0
        %v741 = vpop.f32.mrf.mxu0
        %v742 = vadd.f32 0.0, %v741
        %v743 = vpop.f32.mrf.mxu0
        %744 = vmatprep.mubr.bf16.mxu0 0
        %745 = vmatmul.mubr.bf16.gmra.mxu0 %v461
        %v746 = vpop.f32.mrf.mxu0
        %v747 = vadd.f32 0.0, %v746
        %v748 = vpop.f32.mrf.mxu0
        %v749 = vpop.f32.mrf.mxu0
        %v750 = vadd.f32 0.0, %v749
        %v751 = vpop.f32.mrf.mxu0
        %752 = vdwg.mxu0
        %v753 = vadd.f32 %v681, %v739
        %v754 = vadd.f32 %v684, %v742
        %v755 = vadd.f32 %v689, %v747
        %v756 = vadd.f32 %v692, %v750
        %v758 = vand.u32 %v700, %v466
        %760 = vmatprep.subr.bf16.mxu0 0
        %761 = vmatpush1.bf16.msra.mxu0 0
        %762 = vmatprep.subr.bf16.mxu0 0
        %763 = vmatpush1.bf16.msra.mxu0 0
        %764 = vmatprep.subr.bf16.mxu0 0
        %765 = vmatpush1.bf16.msra.mxu0 0
        %766 = vmatprep.subr.bf16.mxu0 0
        %767 = vmatpush1.bf16.msra.mxu0 0
        %768 = vmatprep.subr.bf16.mxu0 0
        %769 = vmatpush1.bf16.msra.mxu0 0
        %770 = vmatprep.subr.bf16.mxu0 0
        %771 = vmatpush1.bf16.msra.mxu0 0
        %772 = vmatprep.subr.bf16.mxu0 0
        %773 = vmatpush1.bf16.msra.mxu0 0
        %774 = vmatprep.subr.bf16.mxu0 0
        %775 = vmatpush1.bf16.msra.mxu0 %v758
        %776 = vmatprep.subr.bf16.mxu0 0
        %777 = vmatpush2.bf16.msra.mxu0 0
        %778 = vmatprep.subr.bf16.mxu0 0
        %779 = vmatpush2.bf16.msra.mxu0 0
        %780 = vmatprep.subr.bf16.mxu0 0
        %781 = vmatpush2.bf16.msra.mxu0 0
        %782 = vmatprep.subr.bf16.mxu0 0
        %783 = vmatpush2.bf16.msra.mxu0 0
        %784 = vmatprep.subr.bf16.mxu0 0
        %785 = vmatpush2.bf16.msra.mxu0 0
        %786 = vmatprep.subr.bf16.mxu0 0
        %787 = vmatpush2.bf16.msra.mxu0 0
        %788 = vmatprep.subr.bf16.mxu0 0
        %789 = vmatpush2.bf16.msra.mxu0 0
        %790 = vmatprep.subr.bf16.mxu0 0
        %791 = vmatpush2.bf16.msra.mxu0 0
        %792 = vmatprep.mubr.bf16.mxu0 0
        %793 = vmatmul.mubr.bf16.gmra.mxu0 %v458
        %v794 = vpop.f32.mrf.mxu0
        %v795 = vadd.f32 0.0, %v794
        %v796 = vpop.f32.mrf.mxu0
        %v797 = vpop.f32.mrf.mxu0
        %v798 = vadd.f32 0.0, %v797
        %v799 = vpop.f32.mrf.mxu0
        %800 = vmatprep.mubr.bf16.mxu0 0
        %801 = vmatmul.mubr.bf16.gmra.mxu0 %v461
        %v802 = vpop.f32.mrf.mxu0
        %v803 = vadd.f32 0.0, %v802
        %v804 = vpop.f32.mrf.mxu0
        %v805 = vpop.f32.mrf.mxu0
        %v806 = vadd.f32 0.0, %v805
        %v807 = vpop.f32.mrf.mxu0
        %808 = vdwg.mxu0
        %v809 = vadd.f32 %v753, %v795
        %v810 = vadd.f32 %v754, %v798
        %v811 = vadd.f32 %v755, %v803
        %v812 = vadd.f32 %v756, %v806
        %v813 = vmul.f32 %v575, 0.0625
        %v814 = vmul.f32 %v576, 0.0625
        %v815 = vmul.f32 %v577, 0.0625
        %v816 = vmul.f32 %v578, 0.0625
        %v817 = vmul.f32 %v575, %v813
        %v818 = vmul.f32 %v576, %v814
        %v819 = vmul.f32 %v577, %v815
        %v820 = vmul.f32 %v578, %v816
        %v821 = vsub.f32 %v809, %v817
        %v822 = vsub.f32 %v810, %v818
        %v823 = vsub.f32 %v811, %v819
        %v824 = vsub.f32 %v812, %v820
        %v825 = vmax.f32 %v821, 0.0
        %v826 = vmax.f32 %v822, 0.0
        %v827 = vmax.f32 %v823, 0.0
        %v828 = vmax.f32 %v824, 0.0
        %v829 = vmul.f32 %v825, 0.06666667
        %v830 = vmul.f32 %v826, 0.06666667
        %v831 = vmul.f32 %v827, 0.06666667
        %v832 = vmul.f32 %v828, 0.06666667
        %v833 = vrsqrt.pop %v829
        %v834 = vmul.f32 %v829, %v833
        %vm835 = vcmp.eq.f32.partialorder %v829, inf
        %v836 = vsel %vm835, %v829, %v834
        %vm837 = vcmp.eq.f32.partialorder %v829, 0.0
        %v838 = vand.u32 %v829, 2147483648
        %v839 = vsel %vm837, %v838, %v836
        %v840 = vrsqrt.pop %v830
        %v841 = vmul.f32 %v830, %v840
        %vm842 = vcmp.eq.f32.partialorder %v830, inf
        %v843 = vsel %vm842, %v830, %v841
        %vm844 = vcmp.eq.f32.partialorder %v830, 0.0
        %v845 = vand.u32 %v830, 2147483648
        %v846 = vsel %vm844, %v845, %v843
        %v847 = vrsqrt.pop %v831
        %v848 = vmul.f32 %v831, %v847
        %vm849 = vcmp.eq.f32.partialorder %v831, inf
        %v850 = vsel %vm849, %v831, %v848
        %vm851 = vcmp.eq.f32.partialorder %v831, 0.0
        %v852 = vand.u32 %v831, 2147483648
        %v853 = vsel %vm851, %v852, %v850
        %v854 = vrsqrt.pop %v832
        %v855 = vmul.f32 %v832, %v854
        %vm856 = vcmp.eq.f32.partialorder %v832, inf
        %v857 = vsel %vm856, %v832, %v855
        %vm858 = vcmp.eq.f32.partialorder %v832, 0.0
        %v859 = vand.u32 %v832, 2147483648
        %v860 = vsel %vm858, %v859, %v857
        %v861 = vsub.f32 %v307, %v813
        %v862 = vsub.f32 %v308, %v814
        %v863 = vsub.f32 %v309, %v815
        %v864 = vsub.f32 %v310, %v816
        %v865 = vadd.f32 %v839, 1e-12
        %v866 = vadd.f32 %v846, 1e-12
        %v867 = vadd.f32 %v853, 1e-12
        %v868 = vadd.f32 %v860, 1e-12
        %v869 = vrcp.pop %v865
        %v870 = vmul.f32 %v861, %v869
        %v871 = vrcp.pop %v866
        %v872 = vmul.f32 %v862, %v871
        %v873 = vrcp.pop %v867
        %v874 = vmul.f32 %v863, %v873
        %v875 = vrcp.pop %v868
        %v876 = vmul.f32 %v864, %v875
        %877 = vst [vmem:[%s252] sm:$0xff] %v870
        %878 = vst [vmem:[%s252 + $0x8] sm:$0xff] %v872
        %879 = vst [vmem:[%s252 + $0x10] sm:$0xff] %v874
        %880 = vst [vmem:[%s252 + $0x18] sm:$0xff] %v876
        %s881 = sand.u32 %s138, 1
        %s882 = scalar_lea.sflag [#allocation3], %s881
        %s883 = sand.u32 %s138, 1
        %s884 = smul.addr %s883, 32
        %s885 = scalar_lea.vmem [#allocation2], %s884
        // Predicated region
        $region37: #{tpu_custom_call.1} parent=35 // pred_check
          %p886 = pneg %p148
        $region38: #{tpu_custom_call.1} parent=35 // pred_check_branch
          %888 = sbr.rel (%p886) target = $region40
        $region39: #{tpu_custom_call.1} parent=35 // pred_region
          %s889 = smul.u32 4, %s23
          %s891 = ssub.s32 512, 512
          %892 = vsyncadd %s882, %s891
          %s893 = smul.addr %s22, 4
          %s894 = sadd.s32 %s889, %s893
          %s895 = smul.addr %s894, 128
          %s896 = scalar_lea.hbm %s4, %s895
          %s897 = sshll.u32 %s885, 4
          %s898 = int_to_ptr.vmem [resolvable:$true] %s897
          %903 = dma.vmem_to_hbm [thread:$0]  %s898, 512, %s896, %s882, 128, 128, 8
        $region40: #{tpu_custom_call.1} parent=35 // pred_fallthru
          _
      $region36: #{tpu_custom_call.1} parent=5 // pred_fallthru
        _
      %p904 = scmp.le.s32.totalorder 2, %s13
      // Predicated region
      $region41: #{tpu_custom_call.1} parent=5 // pred_check
        %p905 = pneg %p904
      $region42: #{tpu_custom_call.1} parent=5 // pred_check_branch
        %907 = sbr.rel (%p905) target = $region44
      $region43: #{tpu_custom_call.1} parent=5 // pred_region
        %s908 = ssub.s32 %s13, 2
        // Predicated region
        $region45: #{tpu_custom_call.1} parent=43 // pred_check
          %p909 = pneg %p154
        $region46: #{tpu_custom_call.1} parent=43 // pred_check_branch
          %911 = sbr.rel (%p909) target = $region48
        $region47: #{tpu_custom_call.1} parent=43 // pred_region
          %s912 = sand.u32 %s139, 1
          %s913 = scalar_lea.sflag [#allocation3], %s912
          %s914 = sand.u32 %s139, 1
          %s915 = smul.addr %s914, 32
          %s916 = scalar_lea.vmem [#allocation2], %s915
          %917 = dma.done %s913, 512
        $region48: #{tpu_custom_call.1} parent=43 // pred_fallthru
          _
      $region44: #{tpu_custom_call.1} parent=5 // pred_fallthru
        _
    $region6: #{tpu_custom_call.1} parent=1 // loop_footer
      %s17 = sadd.s32 1, %s13
    $region7: #{tpu_custom_call.1} parent=1 // loop_footer_branch
      %12 = sbr.rel target = $region3
    $region8: #{tpu_custom_call.1} parent=1 // loop_exit
      _
    %918 = vsyncpa [#allocation3], 1
    %s919 = scalar_lea.sflag [#allocation3], 1
    %920 = vsyncpa %s919, 1

</llo_original>
